<compile_context>
chip_gen: v7x
topology: tpu7x:2x2x1
jax: 0.10.0
libtpu: 0.0.40
codegen_flags: <defaults>
</compile_context>

<pallas_src>
import functools

import numpy as np
import jax
import jax.numpy as jnp
from jax import lax
from jax.experimental import pallas as pl
from jax.experimental.pallas import tpu as pltpu

# ----------------------------- problem sizes -----------------------------
N, H, W = 2, 16, 16
FILTERS = [4, 8, 8]                 # [Cin, Cmid, Cout]; Cin != Cout -> skip conv+BN
CIN, CMID, COUT = FILTERS
CINP = 8                            # Cin zero-padded so the x slab is 128 lanes wide
EPS = 1e-5
NH = N * H                          # slab rows


# ------------------------------ Pallas kernel -----------------------------
def _resblock_kernel(x_ref,                       # (NH, W*CINP)        input slab
                     mx_ref,                      # (3*W*CINP, W*(CMID+COUT)) conv1+skip
                     b1_ref,                      # (1, W*CMID)         BN1 bias (tiled)
                     m2_ref,                      # (3*W*CMID, W*COUT)  conv2 band matrix
                     bout_ref,                    # (1, W*COUT)         BN2+BNskip bias
                     out_ref):                    # (NH, W*COUT)        lane-dense output
    # Per-image H-boundary masks over the slab-row (sublane) axis:
    # rows of different images in the batch must never bleed into each other.
    y = lax.broadcasted_iota(jnp.int32, (NH, 1), 0) % H
    up_ok = y > 0            # output row y reads input row y-1
    dn_ok = y < H - 1        # output row y reads input row y+1

    def taps(a):
        # [row-1, row, row+1] taps, concatenated along lanes (all pieces 128-wide).
        a_up = jnp.where(up_ok, pltpu.roll(a, 1, axis=0), 0.0)
        a_dn = jnp.where(dn_ok, pltpu.roll(a, NH - 1, axis=0), 0.0)
        return jnp.concatenate([a_up, a, a_dn], axis=1)

    x = x_ref[...]

    # Fused conv1 + skip conv: one (NH, 3*W*CINP) x (3*W*CINP, W*(CMID+COUT)) matmul.
    hx = jnp.dot(taps(x), mx_ref[...], preferred_element_type=jnp.float32)
    h1 = jnp.maximum(hx[:, :W * CMID] + b1_ref[...], 0.0)   # conv1 -> BN1 -> ReLU
    sk = hx[:, W * CMID:]                                    # skip conv (bias added at end)

    # conv2: one (NH, 3*W*CMID) x (3*W*CMID, W*COUT) matmul.
    h2 = jnp.dot(taps(h1), m2_ref[...], preferred_element_type=jnp.float32)

    # residual add + combined BN biases + ReLU; (32, 128) unmasked stores.
    out_ref[...] = jnp.maximum(h2 + sk + bout_ref[...], 0.0)


# ------------------------------- JAX wrapper -------------------------------
@jax.jit
def residual_block_forward(x_nchw, kernel_params):
    """PyTorch-equivalent forward. x_nchw: (N, Cin, H, W) float32."""
    (mx, b1_slab, m2, bout_slab) = kernel_params

    # NCHW -> channels-last slab (N*H, W*CINP); pad Cin 4->8 for full-lane loads.
    x_nhwc = jnp.transpose(x_nchw, (0, 2, 3, 1))
    x_nhwc = jnp.pad(x_nhwc, ((0, 0), (0, 0), (0, 0), (0, CINP - CIN)))
    x_slab = x_nhwc.reshape(NH, W * CINP)

    flops = (2 * NH * (3 * W * CINP) * (W * (CMID + COUT))
             + 2 * NH * (3 * W * CMID) * (W * COUT))
    bytes_accessed = 4 * (x_slab.size + mx.size + b1_slab.size
                          + m2.size + bout_slab.size + NH * W * COUT)

    vmem = functools.partial(pl.BlockSpec, memory_space=pltpu.MemorySpace.VMEM)
    out_slab = pl.pallas_call(
        _resblock_kernel,
        out_shape=jax.ShapeDtypeStruct((NH, W * COUT), jnp.float32),
        in_specs=[vmem()] * 5,
        out_specs=vmem(),
        compiler_params=pltpu.CompilerParams(vmem_limit_bytes=4 << 20),
        cost_estimate=pl.CostEstimate(flops=flops, transcendentals=0,
                                      bytes_accessed=bytes_accessed),
    )(x_slab, mx, b1_slab, m2, bout_slab)

    out_nhwc = out_slab.reshape(N, H, W, COUT)
    return jnp.transpose(out_nhwc, (0, 3, 1, 2))           # back to NCHW


# --------------------------- parameter construction ---------------------------
def fold_bn(conv_bias, gamma, beta, mean, var):
    """Fold conv bias + eval-mode BatchNorm into per-channel (scale, bias)."""
    scale = gamma / jnp.sqrt(var + EPS)
    bias = beta + scale * (conv_bias - mean)
    return scale.reshape(1, -1), bias.reshape(1, -1)


def _band_matrix(w):
    """w: (3,3,ci,co) (scale-folded) -> (3, W*ci, W*co) band matrices (one per dy).

    M[dy, xin*ci+ci_, xout*co+co_] = w[dy, dx, ci_, co_] where xin = xout + dx - 1,
    zero otherwise (bakes in the W-direction taps and the W zero-padding).
    """
    ci, co = w.shape[2], w.shape[3]
    xs = np.arange(W)
    band = np.stack([(xs[:, None] == xs[None, :] + dx - 1).astype(np.float32)
                     for dx in range(3)])                    # (3, W_in, W_out)
    m = jnp.einsum("dpx,ydio->ypixo", jnp.asarray(band), w)  # (3, W, ci, W, co)
    return m.reshape(3, W * ci, W * co)


def _pad_ci(w, ci_pad):
    ci = w.shape[2]
    if ci == ci_pad:
        return w
    return jnp.pad(w, ((0, 0), (0, 0), (0, ci_pad - ci), (0, 0)))


def prepare_kernel_params(params):
    """Fold BN scales into weights, build flattened band matrices and bias slabs."""
    (w1, s1, b1, w2, s2, b2, ws, ss, bs) = params

    m1 = _band_matrix(_pad_ci(w1 * s1, CINP))    # (3, W*CINP, W*CMID)
    msk = _band_matrix(_pad_ci(ws * ss, CINP))   # (3, W*CINP, W*COUT)
    m2 = _band_matrix(w2 * s2)                   # (3, W*CMID, W*COUT)

    # Fuse conv1 + skip along output lanes, flatten the 3 dy taps into the K dim.
    mx = jnp.concatenate([m1, msk], axis=2)                  # (3, 128, 256)
    mx_flat = mx.reshape(3 * W * CINP, W * (CMID + COUT))    # (384, 256)
    m2_flat = m2.reshape(3 * W * CMID, W * COUT)             # (384, 128)

    b1_slab = jnp.tile(b1.reshape(-1), W).reshape(1, W * CMID)
    bout_slab = jnp.tile((b2 + bs).reshape(-1), W).reshape(1, W * COUT)

    return (mx_flat, b1_slab, m2_flat, bout_slab)


def make_params(key):
    ks = jax.random.split(key, 18)

    def conv_w(k, cin, cout):   # HWIO layout
        return 0.1 * jax.random.normal(k, (3, 3, cin, cout), jnp.float32)

    def bn(kg, kb, km, kv, c):
        gamma = 1.0 + 0.1 * jax.random.normal(kg, (c,), jnp.float32)
        beta = 0.1 * jax.random.normal(kb, (c,), jnp.float32)
        mean = 0.1 * jax.random.normal(km, (c,), jnp.float32)
        var = 1.0 + 0.1 * jnp.abs(jax.random.normal(kv, (c,), jnp.float32))
        return gamma, beta, mean, var

    # block conv1 + BN1
    w1 = conv_w(ks[0], CIN, CMID)
    cb1 = 0.1 * jax.random.normal(ks[1], (CMID,), jnp.float32)
    s1, b1 = fold_bn(cb1, *bn(ks[2], ks[3], ks[4], ks[5], CMID))
    # block conv2 + BN2
    w2 = conv_w(ks[6], CMID, COUT)
    cb2 = 0.1 * jax.random.normal(ks[7], (COUT,), jnp.float32)
    s2, b2 = fold_bn(cb2, *bn(ks[8], ks[9], ks[10], ks[11], COUT))
    # skip conv + BN (independent keys)
    ws = conv_w(ks[12], CIN, COUT)
    cbs = 0.1 * jax.random.normal(ks[13], (COUT,), jnp.float32)
    ss, bs = fold_bn(cbs, *bn(ks[14], ks[15], ks[16], ks[17], COUT))

    return (w1, s1, b1, w2, s2, b2, ws, ss, bs)


# ------------------------------- pure-JAX reference -------------------------------
def reference_forward(x_nchw, params):
    (w1, s1, b1, w2, s2, b2, ws, ss, bs) = params
    x = jnp.transpose(x_nchw, (0, 2, 3, 1))

    def conv(x_nhwc, w):
        return lax.conv_general_dilated(
            x_nhwc, w, window_strides=(1, 1), padding="SAME",
            dimension_numbers=("NHWC", "HWIO", "NHWC"))

    h = jnp.maximum(conv(x, w1) * s1 + b1, 0.0)
    h = conv(h, w2) * s2 + b2
    sk = conv(x, ws) * ss + bs
    out = jnp.maximum(h + sk, 0.0)
    return jnp.transpose(out, (0, 3, 1, 2))


# ------------------------------------- main -------------------------------------
if __name__ == "__main__":
    key = jax.random.PRNGKey(0)
    kx, kp = jax.random.split(key)
    x = jax.random.normal(kx, (N, CIN, H, W), jnp.float32)
    params = make_params(kp)
    kparams = prepare_kernel_params(params)

    out = residual_block_forward(x, kparams)
    out = jax.block_until_ready(out)

    ref = reference_forward(x, params)
    assert out.shape == (N, COUT, H, W), out.shape
    assert jnp.allclose(out, ref, atol=1e-4, rtol=1e-4), \
        float(jnp.max(jnp.abs(out - ref)))

    print("KERNEL_OK")
</pallas_src>

<mosaic_0001>
module attributes {stable_mosaic.version = 11 : i64} {
  func.func @_resblock_kernel(%arg0: memref<32x128xf32, #tpu.memory_space<vmem>>, %arg1: memref<384x256xf32, #tpu.memory_space<vmem>>, %arg2: memref<1x128xf32, #tpu.memory_space<vmem>>, %arg3: memref<384x128xf32, #tpu.memory_space<vmem>>, %arg4: memref<1x128xf32, #tpu.memory_space<vmem>>, %arg5: memref<32x128xf32, #tpu.memory_space<vmem>>) attributes {dimension_semantics = [], scalar_prefetch = 0 : i64, scratch_operands = 0 : i64, tpu.core_type = #tpu.core_type<tc>} {
    %0 = tpu.iota {dimensions = array<i32: 0>} : vector<32x1xi32>
    %c16_i32 = arith.constant 16 : i32
    %c0_i32 = arith.constant 0 : i32
    %1 = arith.cmpi eq, %c16_i32, %c0_i32 : i32
    %c1_i32 = arith.constant 1 : i32
    %2 = arith.select %1, %c1_i32, %c16_i32 : i32
    %3 = vector.broadcast %2 : i32 to vector<32x1xi32>
    %4 = arith.remsi %0, %3 : vector<32x1xi32>
    %c0_i32_0 = arith.constant 0 : i32
    %5 = vector.broadcast %c0_i32_0 : i32 to vector<32x1xi32>
    %6 = arith.cmpi ne, %4, %5 : vector<32x1xi32>
    %c0_i32_1 = arith.constant 0 : i32
    %7 = vector.broadcast %c0_i32_1 : i32 to vector<32x1xi32>
    %8 = arith.cmpi slt, %4, %7 : vector<32x1xi32>
    %c0_i32_2 = arith.constant 0 : i32
    %9 = arith.cmpi slt, %2, %c0_i32_2 : i32
    %10 = vector.broadcast %9 : i1 to vector<32x1xi1>
    %11 = vector.broadcast %10 : vector<32x1xi1> to vector<32x1xi1>
    %12 = arith.xori %8, %11 : vector<32x1xi1>
    %13 = arith.andi %12, %6 : vector<32x1xi1>
    %14 = vector.broadcast %2 : i32 to vector<32x1xi32>
    %15 = arith.addi %4, %14 : vector<32x1xi32>
    %16 = arith.select %13, %15, %4 : vector<32x1xi1>, vector<32x1xi32>
    %c0_i32_3 = arith.constant 0 : i32
    %17 = vector.broadcast %c0_i32_3 : i32 to vector<32x1xi32>
    %18 = arith.cmpi sgt, %16, %17 : vector<32x1xi32>
    %c15_i32 = arith.constant 15 : i32
    %19 = vector.broadcast %c15_i32 : i32 to vector<32x1xi32>
    %20 = arith.cmpi slt, %16, %19 : vector<32x1xi32>
    %c0 = arith.constant 0 : index
    %c0_4 = arith.constant 0 : index
    %21 = vector.load %arg0[%c0, %c0_4] : memref<32x128xf32, #tpu.memory_space<vmem>>, vector<32x128xf32>
    %c1_i32_5 = arith.constant 1 : i32
    %22 = tpu.dynamic_rotate %21 by %c1_i32_5 dim 0 : vector<32x128xf32>, i32 -> vector<32x128xf32>
    %cst = arith.constant 0.000000e+00 : f32
    %23 = vector.shape_cast %18 : vector<32x1xi1> to vector<32x1xi1>
    %24 = vector.broadcast %23 : vector<32x1xi1> to vector<32x128xi1>
    %25 = vector.broadcast %cst : f32 to vector<32x128xf32>
    %26 = arith.select %24, %22, %25 : vector<32x128xi1>, vector<32x128xf32>
    %c31_i32 = arith.constant 31 : i32
    %27 = tpu.dynamic_rotate %21 by %c31_i32 dim 0 : vector<32x128xf32>, i32 -> vector<32x128xf32>
    %cst_6 = arith.constant 0.000000e+00 : f32
    %28 = vector.shape_cast %20 : vector<32x1xi1> to vector<32x1xi1>
    %29 = vector.broadcast %28 : vector<32x1xi1> to vector<32x128xi1>
    %30 = vector.broadcast %cst_6 : f32 to vector<32x128xf32>
    %31 = arith.select %29, %27, %30 : vector<32x128xi1>, vector<32x128xf32>
    %32 = tpu.concatenate %26, %21, %31 in 1 : vector<32x128xf32>, vector<32x128xf32>, vector<32x128xf32> -> vector<32x384xf32>
    %c0_7 = arith.constant 0 : index
    %c0_8 = arith.constant 0 : index
    %33 = vector.load %arg1[%c0_7, %c0_8] : memref<384x256xf32, #tpu.memory_space<vmem>>, vector<384x256xf32>
    %cst_9 = arith.constant dense<0.000000e+00> : vector<32x256xf32>
    %34 = tpu.matmul %32, %33, %cst_9 {dimension_numbers = #tpu.dot_dimension_numbers<[1], [0], [0], [1], [0, 0, 1, 1], [], []>} : vector<32x384xf32>, vector<384x256xf32>, vector<32x256xf32> -> vector<32x256xf32>
    %35 = vector.extract_strided_slice %34 {offsets = [0, 0], sizes = [32, 128], strides = [1, 1]} : vector<32x256xf32> to vector<32x128xf32>
    %c0_10 = arith.constant 0 : index
    %c0_11 = arith.constant 0 : index
    %36 = vector.load %arg2[%c0_10, %c0_11] : memref<1x128xf32, #tpu.memory_space<vmem>>, vector<1x128xf32>
    %37 = vector.broadcast %36 : vector<1x128xf32> to vector<32x128xf32>
    %38 = arith.addf %35, %37 : vector<32x128xf32>
    %cst_12 = arith.constant 0.000000e+00 : f32
    %39 = vector.broadcast %cst_12 : f32 to vector<32x128xf32>
    %40 = arith.maximumf %38, %39 : vector<32x128xf32>
    %41 = vector.extract_strided_slice %34 {offsets = [0, 128], sizes = [32, 128], strides = [1, 1]} : vector<32x256xf32> to vector<32x128xf32>
    %c1_i32_13 = arith.constant 1 : i32
    %42 = tpu.dynamic_rotate %40 by %c1_i32_13 dim 0 : vector<32x128xf32>, i32 -> vector<32x128xf32>
    %cst_14 = arith.constant 0.000000e+00 : f32
    %43 = vector.shape_cast %18 : vector<32x1xi1> to vector<32x1xi1>
    %44 = vector.broadcast %43 : vector<32x1xi1> to vector<32x128xi1>
    %45 = vector.broadcast %cst_14 : f32 to vector<32x128xf32>
    %46 = arith.select %44, %42, %45 : vector<32x128xi1>, vector<32x128xf32>
    %c31_i32_15 = arith.constant 31 : i32
    %47 = tpu.dynamic_rotate %40 by %c31_i32_15 dim 0 : vector<32x128xf32>, i32 -> vector<32x128xf32>
    %cst_16 = arith.constant 0.000000e+00 : f32
    %48 = vector.shape_cast %20 : vector<32x1xi1> to vector<32x1xi1>
    %49 = vector.broadcast %48 : vector<32x1xi1> to vector<32x128xi1>
    %50 = vector.broadcast %cst_16 : f32 to vector<32x128xf32>
    %51 = arith.select %49, %47, %50 : vector<32x128xi1>, vector<32x128xf32>
    %52 = tpu.concatenate %46, %40, %51 in 1 : vector<32x128xf32>, vector<32x128xf32>, vector<32x128xf32> -> vector<32x384xf32>
    %c0_17 = arith.constant 0 : index
    %c0_18 = arith.constant 0 : index
    %53 = vector.load %arg3[%c0_17, %c0_18] : memref<384x128xf32, #tpu.memory_space<vmem>>, vector<384x128xf32>
    %cst_19 = arith.constant dense<0.000000e+00> : vector<32x128xf32>
    %54 = tpu.matmul %52, %53, %cst_19 {dimension_numbers = #tpu.dot_dimension_numbers<[1], [0], [0], [1], [0, 0, 1, 1], [], []>} : vector<32x384xf32>, vector<384x128xf32>, vector<32x128xf32> -> vector<32x128xf32>
    %55 = arith.addf %54, %41 : vector<32x128xf32>
    %c0_20 = arith.constant 0 : index
    %c0_21 = arith.constant 0 : index
    %56 = vector.load %arg4[%c0_20, %c0_21] : memref<1x128xf32, #tpu.memory_space<vmem>>, vector<1x128xf32>
    %57 = vector.broadcast %56 : vector<1x128xf32> to vector<32x128xf32>
    %58 = arith.addf %55, %57 : vector<32x128xf32>
    %cst_22 = arith.constant 0.000000e+00 : f32
    %59 = vector.broadcast %cst_22 : f32 to vector<32x128xf32>
    %60 = arith.maximumf %58, %59 : vector<32x128xf32>
    %c0_23 = arith.constant 0 : index
    %c0_24 = arith.constant 0 : index
    %61 = vector.load %arg5[%c0_23, %c0_24] : memref<32x128xf32, #tpu.memory_space<vmem>>, vector<32x128xf32>
    tpu.vector_store %arg5[%c0_23, %c0_24], %60 {strides = array<i32>} : memref<32x128xf32, #tpu.memory_space<vmem>>, vector<32x128xf32>,
    return
  }
}

</mosaic_0001>

<llo_original>
// kernel: residual_block_forward.1
$region0: #{residual_block_forward.1}
  #allocation0 [shape = 'u32[]', space=smem, size = 0x4, offset = 0x4, fixed_abs, tag = 'smem constant byte address 0x4 - core index']
  #allocation1 [shape = 'u32[144,128]{1,0:T(1,128)}', space=vmem, size = 0x12000, scoped, tag = 'internal scratch']
  %s0 = inlined_call_operand.vmem [shape: f32[32,128], index: 0, kind: input, shape index: {}]
  %s1 = inlined_call_operand.vmem [shape: f32[384,256], index: 1, kind: input, shape index: {}]
  %s2 = inlined_call_operand.vmem [shape: f32[1,128], index: 2, kind: input, shape index: {}]
  %s3 = inlined_call_operand.vmem [shape: f32[384,128], index: 3, kind: input, shape index: {}]
  %s4 = inlined_call_operand.vmem [shape: f32[1,128], index: 4, kind: input, shape index: {}]
  %s5 = inlined_call_operand.vmem [shape: f32[32,128], index: 5, kind: output, shape index: {}]
  %s6 = sld [smem:[#allocation0]]
  $region30: #{residual_block_forward.1} parent=0
    _
  %s8 = ssub.s32 1, %s6
  %s9 = scalar_select 0, %s8, %s6
  // Predicated region
  $region2: #{residual_block_forward.1} parent=0 // pred_check
    _
  $region3: #{residual_block_forward.1} parent=0 // pred_check_branch
    %11 = sbr.rel (0) target = $region5
  $region4: #{residual_block_forward.1} parent=0 // pred_region
    _
  $region5: #{residual_block_forward.1} parent=0 // pred_fallthru
    _
  // Predicated region
  $region6: #{residual_block_forward.1} parent=0 // pred_check
    _
  $region7: #{residual_block_forward.1} parent=0 // pred_check_branch
    %13 = sbr.rel (0) target = $region9
  $region8: #{residual_block_forward.1} parent=0 // pred_region
    _
  $region9: #{residual_block_forward.1} parent=0 // pred_fallthru
    _
  // Predicated region
  $region10: #{residual_block_forward.1} parent=0 // pred_check
    _
  $region11: #{residual_block_forward.1} parent=0 // pred_check_branch
    %15 = sbr.rel (0) target = $region13
  $region12: #{residual_block_forward.1} parent=0 // pred_region
    _
  $region13: #{residual_block_forward.1} parent=0 // pred_fallthru
    _
  // Predicated region
  $region14: #{residual_block_forward.1} parent=0 // pred_check
    _
  $region15: #{residual_block_forward.1} parent=0 // pred_check_branch
    %17 = sbr.rel (0) target = $region17
  $region16: #{residual_block_forward.1} parent=0 // pred_region
    _
  $region17: #{residual_block_forward.1} parent=0 // pred_fallthru
    _
  // Predicated region
  $region18: #{residual_block_forward.1} parent=0 // pred_check
    _
  $region19: #{residual_block_forward.1} parent=0 // pred_check_branch
    %19 = sbr.rel (0) target = $region21
  $region20: #{residual_block_forward.1} parent=0 // pred_region
    _
  $region21: #{residual_block_forward.1} parent=0 // pred_fallthru
    _
  %v20 = vlaneseq
  %v21 = vshrl.u32 %v20, 7
  %v22 = vadd.s32 %v21, 8
  %v23 = vadd.s32 %v21, 16
  %v24 = vadd.s32 %v21, 24
  %vm25 = vcmp.lt.s32.totalorder %v21, 0
  %v26 = vsub.s32 0, %v21
  %v27 = vsel %vm25, %v26, %v21
  %v28 = vshrl.u32 %v27, 4
  %v29 = vand.u32 %v27, 15
  %v30 = vsub.s32 0, %v29
  %v31 = vsel %vm25, %v30, %v29
  %vm32 = vcmp.lt.s32.totalorder %v22, 0
  %v33 = vsub.s32 0, %v22
  %v34 = vsel %vm32, %v33, %v22
  %v35 = vshrl.u32 %v34, 4
  %v36 = vand.u32 %v34, 15
  %v37 = vsub.s32 0, %v36
  %v38 = vsel %vm32, %v37, %v36
  %vm39 = vcmp.lt.s32.totalorder %v23, 0
  %v40 = vsub.s32 0, %v23
  %v41 = vsel %vm39, %v40, %v23
  %v42 = vshrl.u32 %v41, 4
  %v43 = vand.u32 %v41, 15
  %v44 = vsub.s32 0, %v43
  %v45 = vsel %vm39, %v44, %v43
  %vm46 = vcmp.lt.s32.totalorder %v24, 0
  %v47 = vsub.s32 0, %v24
  %v48 = vsel %vm46, %v47, %v24
  %v49 = vshrl.u32 %v48, 4
  %v50 = vand.u32 %v48, 15
  %v51 = vsub.s32 0, %v50
  %v52 = vsel %vm46, %v51, %v50
  %vm53 = vcmp.ne.s32.totalorder %v31, 0
  %vm54 = vcmp.ne.s32.totalorder %v38, 0
  %vm55 = vcmp.ne.s32.totalorder %v45, 0
  %vm56 = vcmp.ne.s32.totalorder %v52, 0
  %vm57 = vcmp.lt.s32.totalorder %v31, 0
  %vm58 = vcmp.lt.s32.totalorder %v38, 0
  %vm59 = vcmp.lt.s32.totalorder %v45, 0
  %vm60 = vcmp.lt.s32.totalorder %v52, 0
  %vm61 = vmand %vm57, %vm53
  %vm62 = vmand %vm58, %vm54
  %vm63 = vmand %vm59, %vm55
  %vm64 = vmand %vm60, %vm56
  %v65 = vadd.s32 %v31, 16
  %v66 = vadd.s32 %v38, 16
  %v67 = vadd.s32 %v45, 16
  %v68 = vadd.s32 %v52, 16
  %v69 = vsel %vm61, %v65, %v31
  %v70 = vsel %vm62, %v66, %v38
  %v71 = vsel %vm63, %v67, %v45
  %v72 = vsel %vm64, %v68, %v52
  %vm73 = vcmp.gt.s32.totalorder %v69, 0
  %vm74 = vcmp.gt.s32.totalorder %v70, 0
  %vm75 = vcmp.gt.s32.totalorder %v71, 0
  %vm76 = vcmp.gt.s32.totalorder %v72, 0
  %vm77 = vcmp.lt.s32.totalorder %v69, 15
  %vm78 = vcmp.lt.s32.totalorder %v70, 15
  %vm79 = vcmp.lt.s32.totalorder %v71, 15
  %vm80 = vcmp.lt.s32.totalorder %v72, 15
  %v81 = vld [vmem:[%s0] sm:$0xff]
  %v82 = vld [vmem:[%s0 + $0x8] sm:$0xff]
  %v83 = vld [vmem:[%s0 + $0x10] sm:$0xff]
  %v84 = vld [vmem:[%s0 + $0x18] sm:$0xff]
  %v85 = vrot.slane %v81, 7
  %v86 = vrot.slane %v82, 7
  %v87 = vrot.slane %v83, 7
  %v88 = vrot.slane %v84, 7
  %vm89 = vcmp.lt.s32.totalorder %v21, 1
  %v90 = vsel %vm89, %v87, %v88
  %v91 = vsel %vm89, %v86, %v87
  %v92 = vsel %vm89, %v85, %v86
  %v93 = vsel %vm89, %v88, %v85
  %v94 = vsel %vm73, 1, 0
  %v95 = vsel %vm74, 1, 0
  %v96 = vsel %vm75, 1, 0
  %v97 = vsel %vm76, 1, 0
  %vm98 = vcmp.eq.s32.totalorder %v94, 1
  %vm99 = vcmp.eq.s32.totalorder %v95, 1
  %vm100 = vcmp.eq.s32.totalorder %v96, 1
  %vm101 = vcmp.eq.s32.totalorder %v97, 1
  %v102 = vsel %vm98, %v93, 0.0
  %v103 = vsel %vm99, %v92, 0.0
  %v104 = vsel %vm100, %v91, 0.0
  %v105 = vsel %vm101, %v90, 0.0
  %v106 = vrot.slane %v81, 1
  %v107 = vrot.slane %v82, 1
  %v108 = vrot.slane %v83, 1
  %v109 = vrot.slane %v84, 1
  %vm110 = vcmp.lt.s32.totalorder %v21, 7
  %v111 = vsel %vm110, %v108, %v109
  %v112 = vsel %vm110, %v107, %v108
  %v113 = vsel %vm110, %v106, %v107
  %v114 = vsel %vm110, %v109, %v106
  %v115 = vsel %vm77, 1, 0
  %v116 = vsel %vm78, 1, 0
  %v117 = vsel %vm79, 1, 0
  %v118 = vsel %vm80, 1, 0
  %vm119 = vcmp.eq.s32.totalorder %v115, 1
  %vm120 = vcmp.eq.s32.totalorder %v116, 1
  %vm121 = vcmp.eq.s32.totalorder %v117, 1
  %vm122 = vcmp.eq.s32.totalorder %v118, 1
  %v123 = vsel %vm119, %v113, 0.0
  %v124 = vsel %vm120, %v112, 0.0
  %v125 = vsel %vm121, %v111, 0.0
  %v126 = vsel %vm122, %v114, 0.0
  %v127 = vld [vmem:[%s1] sm:$0xff]
  %v128 = vld [vmem:[%s1 + $0x8] sm:$0xff]
  %v129 = vld [vmem:[%s1 + $0x10] sm:$0xff]
  %v130 = vld [vmem:[%s1 + $0x18] sm:$0xff]
  %v131 = vld [vmem:[%s1 + $0x20] sm:$0xff]
  %v132 = vld [vmem:[%s1 + $0x28] sm:$0xff]
  %v133 = vld [vmem:[%s1 + $0x30] sm:$0xff]
  %v134 = vld [vmem:[%s1 + $0x38] sm:$0xff]
  %v135 = vld [vmem:[%s1 + $0x40] sm:$0xff]
  %v136 = vld [vmem:[%s1 + $0x48] sm:$0xff]
  %v137 = vld [vmem:[%s1 + $0x50] sm:$0xff]
  %v138 = vld [vmem:[%s1 + $0x58] sm:$0xff]
  %v139 = vld [vmem:[%s1 + $0x60] sm:$0xff]
  %v140 = vld [vmem:[%s1 + $0x68] sm:$0xff]
  %v141 = vld [vmem:[%s1 + $0x70] sm:$0xff]
  %v142 = vld [vmem:[%s1 + $0x78] sm:$0xff]
  %v143 = vld [vmem:[%s1 + $0x80] sm:$0xff]
  %v144 = vld [vmem:[%s1 + $0x88] sm:$0xff]
  %v145 = vld [vmem:[%s1 + $0x90] sm:$0xff]
  %v146 = vld [vmem:[%s1 + $0x98] sm:$0xff]
  %v147 = vld [vmem:[%s1 + $0xa0] sm:$0xff]
  %v148 = vld [vmem:[%s1 + $0xa8] sm:$0xff]
  %v149 = vld [vmem:[%s1 + $0xb0] sm:$0xff]
  %v150 = vld [vmem:[%s1 + $0xb8] sm:$0xff]
  %v151 = vld [vmem:[%s1 + $0xc0] sm:$0xff]
  %v152 = vld [vmem:[%s1 + $0xc8] sm:$0xff]
  %v153 = vld [vmem:[%s1 + $0xd0] sm:$0xff]
  %v154 = vld [vmem:[%s1 + $0xd8] sm:$0xff]
  %v155 = vld [vmem:[%s1 + $0xe0] sm:$0xff]
  %v156 = vld [vmem:[%s1 + $0xe8] sm:$0xff]
  %v157 = vld [vmem:[%s1 + $0xf0] sm:$0xff]
  %v158 = vld [vmem:[%s1 + $0xf8] sm:$0xff]
  %v159 = vld [vmem:[%s1 + $0x100] sm:$0xff]
  %v160 = vld [vmem:[%s1 + $0x108] sm:$0xff]
  %v161 = vld [vmem:[%s1 + $0x110] sm:$0xff]
  %v162 = vld [vmem:[%s1 + $0x118] sm:$0xff]
  %v163 = vld [vmem:[%s1 + $0x120] sm:$0xff]
  %v164 = vld [vmem:[%s1 + $0x128] sm:$0xff]
  %v165 = vld [vmem:[%s1 + $0x130] sm:$0xff]
  %v166 = vld [vmem:[%s1 + $0x138] sm:$0xff]
  %v167 = vld [vmem:[%s1 + $0x140] sm:$0xff]
  %v168 = vld [vmem:[%s1 + $0x148] sm:$0xff]
  %v169 = vld [vmem:[%s1 + $0x150] sm:$0xff]
  %v170 = vld [vmem:[%s1 + $0x158] sm:$0xff]
  %v171 = vld [vmem:[%s1 + $0x160] sm:$0xff]
  %v172 = vld [vmem:[%s1 + $0x168] sm:$0xff]
  %v173 = vld [vmem:[%s1 + $0x170] sm:$0xff]
  %v174 = vld [vmem:[%s1 + $0x178] sm:$0xff]
  %v175 = vld [vmem:[%s1 + $0x180] sm:$0xff]
  %v176 = vld [vmem:[%s1 + $0x188] sm:$0xff]
  %v177 = vld [vmem:[%s1 + $0x190] sm:$0xff]
  %v178 = vld [vmem:[%s1 + $0x198] sm:$0xff]
  %v179 = vld [vmem:[%s1 + $0x1a0] sm:$0xff]
  %v180 = vld [vmem:[%s1 + $0x1a8] sm:$0xff]
  %v181 = vld [vmem:[%s1 + $0x1b0] sm:$0xff]
  %v182 = vld [vmem:[%s1 + $0x1b8] sm:$0xff]
  %v183 = vld [vmem:[%s1 + $0x1c0] sm:$0xff]
  %v184 = vld [vmem:[%s1 + $0x1c8] sm:$0xff]
  %v185 = vld [vmem:[%s1 + $0x1d0] sm:$0xff]
  %v186 = vld [vmem:[%s1 + $0x1d8] sm:$0xff]
  %v187 = vld [vmem:[%s1 + $0x1e0] sm:$0xff]
  %v188 = vld [vmem:[%s1 + $0x1e8] sm:$0xff]
  %v189 = vld [vmem:[%s1 + $0x1f0] sm:$0xff]
  %v190 = vld [vmem:[%s1 + $0x1f8] sm:$0xff]
  %v191 = vld [vmem:[%s1 + $0x200] sm:$0xff]
  %v192 = vld [vmem:[%s1 + $0x208] sm:$0xff]
  %v193 = vld [vmem:[%s1 + $0x210] sm:$0xff]
  %v194 = vld [vmem:[%s1 + $0x218] sm:$0xff]
  %v195 = vld [vmem:[%s1 + $0x220] sm:$0xff]
  %v196 = vld [vmem:[%s1 + $0x228] sm:$0xff]
  %v197 = vld [vmem:[%s1 + $0x230] sm:$0xff]
  %v198 = vld [vmem:[%s1 + $0x238] sm:$0xff]
  %v199 = vld [vmem:[%s1 + $0x240] sm:$0xff]
  %v200 = vld [vmem:[%s1 + $0x248] sm:$0xff]
  %v201 = vld [vmem:[%s1 + $0x250] sm:$0xff]
  %v202 = vld [vmem:[%s1 + $0x258] sm:$0xff]
  %v203 = vld [vmem:[%s1 + $0x260] sm:$0xff]
  %v204 = vld [vmem:[%s1 + $0x268] sm:$0xff]
  %v205 = vld [vmem:[%s1 + $0x270] sm:$0xff]
  %v206 = vld [vmem:[%s1 + $0x278] sm:$0xff]
  %v207 = vld [vmem:[%s1 + $0x280] sm:$0xff]
  %v208 = vld [vmem:[%s1 + $0x288] sm:$0xff]
  %v209 = vld [vmem:[%s1 + $0x290] sm:$0xff]
  %v210 = vld [vmem:[%s1 + $0x298] sm:$0xff]
  %v211 = vld [vmem:[%s1 + $0x2a0] sm:$0xff]
  %v212 = vld [vmem:[%s1 + $0x2a8] sm:$0xff]
  %v213 = vld [vmem:[%s1 + $0x2b0] sm:$0xff]
  %v214 = vld [vmem:[%s1 + $0x2b8] sm:$0xff]
  %v215 = vld [vmem:[%s1 + $0x2c0] sm:$0xff]
  %v216 = vld [vmem:[%s1 + $0x2c8] sm:$0xff]
  %v217 = vld [vmem:[%s1 + $0x2d0] sm:$0xff]
  %v218 = vld [vmem:[%s1 + $0x2d8] sm:$0xff]
  %v219 = vld [vmem:[%s1 + $0x2e0] sm:$0xff]
  %v220 = vld [vmem:[%s1 + $0x2e8] sm:$0xff]
  %v221 = vld [vmem:[%s1 + $0x2f0] sm:$0xff]
  %v222 = vld [vmem:[%s1 + $0x2f8] sm:$0xff]
  %223 = vmatprep.subr.mxu0 %v128
  %224 = vmatpush1.msra.mxu0 %v127
  %225 = vmatprep.subr.mxu0 %v130
  %226 = vmatpush1.msra.mxu0 %v129
  %227 = vmatprep.subr.mxu0 %v132
  %228 = vmatpush1.msra.mxu0 %v131
  %229 = vmatprep.subr.mxu0 %v134
  %230 = vmatpush1.msra.mxu0 %v133
  %231 = vmatprep.subr.mxu0 %v136
  %232 = vmatpush1.msra.mxu0 %v135
  %233 = vmatprep.subr.mxu0 %v138
  %234 = vmatpush1.msra.mxu0 %v137
  %235 = vmatprep.subr.mxu0 %v140
  %236 = vmatpush1.msra.mxu0 %v139
  %237 = vmatprep.subr.mxu0 %v142
  %238 = vmatpush1.msra.mxu0 %v141
  %239 = vmatprep.subr.mxu0 %v144
  %240 = vmatpush1.msra.mxu0 %v143
  %241 = vmatprep.subr.mxu0 %v146
  %242 = vmatpush1.msra.mxu0 %v145
  %243 = vmatprep.subr.mxu0 %v148
  %244 = vmatpush1.msra.mxu0 %v147
  %245 = vmatprep.subr.mxu0 %v150
  %246 = vmatpush1.msra.mxu0 %v149
  %247 = vmatprep.subr.mxu0 %v152
  %248 = vmatpush1.msra.mxu0 %v151
  %249 = vmatprep.subr.mxu0 %v154
  %250 = vmatpush1.msra.mxu0 %v153
  %251 = vmatprep.subr.mxu0 %v156
  %252 = vmatpush1.msra.mxu0 %v155
  %253 = vmatprep.subr.mxu0 %v158
  %254 = vmatpush1.msra.mxu0 %v157
  %255 = vmatprep.subr.mxu0 %v160
  %256 = vmatpush1.msra.mxu0 %v159
  %257 = vmatprep.subr.mxu0 %v162
  %258 = vmatpush1.msra.mxu0 %v161
  %259 = vmatprep.subr.mxu0 %v164
  %260 = vmatpush1.msra.mxu0 %v163
  %261 = vmatprep.subr.mxu0 %v166
  %262 = vmatpush1.msra.mxu0 %v165
  %263 = vmatprep.subr.mxu0 %v168
  %264 = vmatpush1.msra.mxu0 %v167
  %265 = vmatprep.subr.mxu0 %v170
  %266 = vmatpush1.msra.mxu0 %v169
  %267 = vmatprep.subr.mxu0 %v172
  %268 = vmatpush1.msra.mxu0 %v171
  %269 = vmatprep.subr.mxu0 %v174
  %270 = vmatpush1.msra.mxu0 %v173
  %271 = vmatprep.subr.mxu0 %v176
  %272 = vmatpush1.msra.mxu0 %v175
  %273 = vmatprep.subr.mxu0 %v178
  %274 = vmatpush1.msra.mxu0 %v177
  %275 = vmatprep.subr.mxu0 %v180
  %276 = vmatpush1.msra.mxu0 %v179
  %277 = vmatprep.subr.mxu0 %v182
  %278 = vmatpush1.msra.mxu0 %v181
  %279 = vmatprep.subr.mxu0 %v184
  %280 = vmatpush1.msra.mxu0 %v183
  %281 = vmatprep.subr.mxu0 %v186
  %282 = vmatpush1.msra.mxu0 %v185
  %283 = vmatprep.subr.mxu0 %v188
  %284 = vmatpush1.msra.mxu0 %v187
  %285 = vmatprep.subr.mxu0 %v190
  %286 = vmatpush1.msra.mxu0 %v189
  %287 = vmatprep.mubr.f32.mxu0 %v81
  %288 = vmatmul.mubr.f32.gmra.mrb[0].mxu0 %v102
  %v289 = vpop.f32.mrb[0].mxu0
  %v290 = vadd.f32 0.0, %v289
  %v291 = vpop.f32.mrb[0].mxu0
  %v292 = vadd.f32 0.0, %v291
  %293 = vmatprep.mubr.f32.mxu0 %v82
  %294 = vmatmul.mubr.f32.gmra.mrb[0].mxu0 %v103
  %v295 = vpop.f32.mrb[0].mxu0
  %v296 = vadd.f32 0.0, %v295
  %v297 = vpop.f32.mrb[0].mxu0
  %v298 = vadd.f32 0.0, %v297
  %299 = vmatprep.mubr.f32.mxu0 %v83
  %300 = vmatmul.mubr.f32.gmra.mrb[0].mxu0 %v104
  %v301 = vpop.f32.mrb[0].mxu0
  %v302 = vadd.f32 0.0, %v301
  %v303 = vpop.f32.mrb[0].mxu0
  %v304 = vadd.f32 0.0, %v303
  %305 = vmatprep.mubr.f32.mxu0 %v84
  %306 = vmatmul.mubr.f32.gmra.mrb[0].mxu0 %v105
  %v307 = vpop.f32.mrb[0].mxu0
  %v308 = vadd.f32 0.0, %v307
  %v309 = vpop.f32.mrb[0].mxu0
  %v310 = vadd.f32 0.0, %v309
  %311 = vdwg.mxu0
  %312 = vmatprep.subr.mxu0 %v192
  %313 = vmatpush1.msra.mxu0 %v191
  %314 = vmatprep.subr.mxu0 %v194
  %315 = vmatpush1.msra.mxu0 %v193
  %316 = vmatprep.subr.mxu0 %v196
  %317 = vmatpush1.msra.mxu0 %v195
  %318 = vmatprep.subr.mxu0 %v198
  %319 = vmatpush1.msra.mxu0 %v197
  %320 = vmatprep.subr.mxu0 %v200
  %321 = vmatpush1.msra.mxu0 %v199
  %322 = vmatprep.subr.mxu0 %v202
  %323 = vmatpush1.msra.mxu0 %v201
  %324 = vmatprep.subr.mxu0 %v204
  %325 = vmatpush1.msra.mxu0 %v203
  %326 = vmatprep.subr.mxu0 %v206
  %327 = vmatpush1.msra.mxu0 %v205
  %328 = vmatprep.subr.mxu0 %v208
  %329 = vmatpush1.msra.mxu0 %v207
  %330 = vmatprep.subr.mxu0 %v210
  %331 = vmatpush1.msra.mxu0 %v209
  %332 = vmatprep.subr.mxu0 %v212
  %333 = vmatpush1.msra.mxu0 %v211
  %334 = vmatprep.subr.mxu0 %v214
  %335 = vmatpush1.msra.mxu0 %v213
  %336 = vmatprep.subr.mxu0 %v216
  %337 = vmatpush1.msra.mxu0 %v215
  %338 = vmatprep.subr.mxu0 %v218
  %339 = vmatpush1.msra.mxu0 %v217
  %340 = vmatprep.subr.mxu0 %v220
  %341 = vmatpush1.msra.mxu0 %v219
  %342 = vmatprep.subr.mxu0 %v222
  %343 = vmatpush1.msra.mxu0 %v221
  %344 = vmatprep.subr.mxu0 0.0
  %345 = vmatpush1.msra.mxu0 0.0
  %346 = vmatprep.subr.mxu0 0.0
  %347 = vmatpush1.msra.mxu0 0.0
  %348 = vmatprep.subr.mxu0 0.0
  %349 = vmatpush1.msra.mxu0 0.0
  %350 = vmatprep.subr.mxu0 0.0
  %351 = vmatpush1.msra.mxu0 0.0
  %352 = vmatprep.subr.mxu0 0.0
  %353 = vmatpush1.msra.mxu0 0.0
  %354 = vmatprep.subr.mxu0 0.0
  %355 = vmatpush1.msra.mxu0 0.0
  %356 = vmatprep.subr.mxu0 0.0
  %357 = vmatpush1.msra.mxu0 0.0
  %358 = vmatprep.subr.mxu0 0.0
  %359 = vmatpush1.msra.mxu0 0.0
  %360 = vmatprep.subr.mxu0 0.0
  %361 = vmatpush1.msra.mxu0 0.0
  %362 = vmatprep.subr.mxu0 0.0
  %363 = vmatpush1.msra.mxu0 0.0
  %364 = vmatprep.subr.mxu0 0.0
  %365 = vmatpush1.msra.mxu0 0.0
  %366 = vmatprep.subr.mxu0 0.0
  %367 = vmatpush1.msra.mxu0 0.0
  %368 = vmatprep.subr.mxu0 0.0
  %369 = vmatpush1.msra.mxu0 0.0
  %370 = vmatprep.subr.mxu0 0.0
  %371 = vmatpush1.msra.mxu0 0.0
  %372 = vmatprep.subr.mxu0 0.0
  %373 = vmatpush1.msra.mxu0 0.0
  %374 = vmatprep.subr.mxu0 0.0
  %375 = vmatpush1.msra.mxu0 0.0
  %376 = vmatprep.mubr.f32.mxu0 0.0
  %377 = vmatmul.mubr.f32.gmra.mrb[0].mxu0 %v123
  %v378 = vpop.f32.mrb[0].mxu0
  %v379 = vadd.f32 %v290, %v378
  %v380 = vpop.f32.mrb[0].mxu0
  %v381 = vadd.f32 %v292, %v380
  %382 = vmatprep.mubr.f32.mxu0 0.0
  %383 = vmatmul.mubr.f32.gmra.mrb[0].mxu0 %v124
  %v384 = vpop.f32.mrb[0].mxu0
  %v385 = vadd.f32 %v296, %v384
  %v386 = vpop.f32.mrb[0].mxu0
  %v387 = vadd.f32 %v298, %v386
  %388 = vmatprep.mubr.f32.mxu0 0.0
  %389 = vmatmul.mubr.f32.gmra.mrb[0].mxu0 %v125
  %v390 = vpop.f32.mrb[0].mxu0
  %v391 = vadd.f32 %v302, %v390
  %v392 = vpop.f32.mrb[0].mxu0
  %v393 = vadd.f32 %v304, %v392
  %394 = vmatprep.mubr.f32.mxu0 0.0
  %395 = vmatmul.mubr.f32.gmra.mrb[0].mxu0 %v126
  %v396 = vpop.f32.mrb[0].mxu0
  %v397 = vadd.f32 %v308, %v396
  %v398 = vpop.f32.mrb[0].mxu0
  %v399 = vadd.f32 %v310, %v398
  %400 = vdwg.mxu0
  %v401 = vld [vmem:[%s2] sm:$0x1]
  %v403 = vlaneseq
  %v404 = vshrl.u32 %v403, 7
  %v405 = vsub.s32 0, %v404
  %v406 = vrot.slane %v401, %v405
  %v408 = vadd.f32 %v379, %v406
  %v409 = vadd.f32 %v385, %v406
  %v410 = vadd.f32 %v391, %v406
  %v411 = vadd.f32 %v397, %v406
  %v412 = vmax.f32 %v408, 0.0
  %v413 = vmax.f32 %v409, 0.0
  %v414 = vmax.f32 %v410, 0.0
  %v415 = vmax.f32 %v411, 0.0
  %v416 = vrot.slane %v412, 7
  %v417 = vrot.slane %v413, 7
  %v418 = vrot.slane %v414, 7
  %v419 = vrot.slane %v415, 7
  %v420 = vsel %vm89, %v418, %v419
  %v421 = vsel %vm89, %v417, %v418
  %v422 = vsel %vm89, %v416, %v417
  %v423 = vsel %vm89, %v419, %v416
  %v424 = vsel %vm98, %v423, 0.0
  %v425 = vsel %vm99, %v422, 0.0
  %v426 = vsel %vm100, %v421, 0.0
  %v427 = vsel %vm101, %v420, 0.0
  %v428 = vrot.slane %v412, 1
  %v429 = vrot.slane %v413, 1
  %v430 = vrot.slane %v414, 1
  %v431 = vrot.slane %v415, 1
  %v432 = vsel %vm110, %v430, %v431
  %v433 = vsel %vm110, %v429, %v430
  %v434 = vsel %vm110, %v428, %v429
  %v435 = vsel %vm110, %v431, %v428
  %v436 = vsel %vm119, %v434, 0.0
  %v437 = vsel %vm120, %v433, 0.0
  %v438 = vsel %vm121, %v432, 0.0
  %v439 = vsel %vm122, %v435, 0.0
  %v440 = vld [vmem:[%s3] sm:$0xff]
  %v441 = vld [vmem:[%s3 + $0x8] sm:$0xff]
  %v442 = vld [vmem:[%s3 + $0x10] sm:$0xff]
  %v443 = vld [vmem:[%s3 + $0x18] sm:$0xff]
  %v444 = vld [vmem:[%s3 + $0x20] sm:$0xff]
  %v445 = vld [vmem:[%s3 + $0x28] sm:$0xff]
  %v446 = vld [vmem:[%s3 + $0x30] sm:$0xff]
  %v447 = vld [vmem:[%s3 + $0x38] sm:$0xff]
  %v448 = vld [vmem:[%s3 + $0x40] sm:$0xff]
  %v449 = vld [vmem:[%s3 + $0x48] sm:$0xff]
  %v450 = vld [vmem:[%s3 + $0x50] sm:$0xff]
  %v451 = vld [vmem:[%s3 + $0x58] sm:$0xff]
  %v452 = vld [vmem:[%s3 + $0x60] sm:$0xff]
  %v453 = vld [vmem:[%s3 + $0x68] sm:$0xff]
  %v454 = vld [vmem:[%s3 + $0x70] sm:$0xff]
  %v455 = vld [vmem:[%s3 + $0x78] sm:$0xff]
  %v456 = vld [vmem:[%s3 + $0x80] sm:$0xff]
  %v457 = vld [vmem:[%s3 + $0x88] sm:$0xff]
  %v458 = vld [vmem:[%s3 + $0x90] sm:$0xff]
  %v459 = vld [vmem:[%s3 + $0x98] sm:$0xff]
  %v460 = vld [vmem:[%s3 + $0xa0] sm:$0xff]
  %v461 = vld [vmem:[%s3 + $0xa8] sm:$0xff]
  %v462 = vld [vmem:[%s3 + $0xb0] sm:$0xff]
  %v463 = vld [vmem:[%s3 + $0xb8] sm:$0xff]
  %v464 = vld [vmem:[%s3 + $0xc0] sm:$0xff]
  %v465 = vld [vmem:[%s3 + $0xc8] sm:$0xff]
  %v466 = vld [vmem:[%s3 + $0xd0] sm:$0xff]
  %v467 = vld [vmem:[%s3 + $0xd8] sm:$0xff]
  %v468 = vld [vmem:[%s3 + $0xe0] sm:$0xff]
  %v469 = vld [vmem:[%s3 + $0xe8] sm:$0xff]
  %v470 = vld [vmem:[%s3 + $0xf0] sm:$0xff]
  %v471 = vld [vmem:[%s3 + $0xf8] sm:$0xff]
  %v472 = vld [vmem:[%s3 + $0x100] sm:$0xff]
  %v473 = vld [vmem:[%s3 + $0x108] sm:$0xff]
  %v474 = vld [vmem:[%s3 + $0x110] sm:$0xff]
  %v475 = vld [vmem:[%s3 + $0x118] sm:$0xff]
  %v476 = vld [vmem:[%s3 + $0x120] sm:$0xff]
  %v477 = vld [vmem:[%s3 + $0x128] sm:$0xff]
  %v478 = vld [vmem:[%s3 + $0x130] sm:$0xff]
  %v479 = vld [vmem:[%s3 + $0x138] sm:$0xff]
  %v480 = vld [vmem:[%s3 + $0x140] sm:$0xff]
  %v481 = vld [vmem:[%s3 + $0x148] sm:$0xff]
  %v482 = vld [vmem:[%s3 + $0x150] sm:$0xff]
  %v483 = vld [vmem:[%s3 + $0x158] sm:$0xff]
  %v484 = vld [vmem:[%s3 + $0x160] sm:$0xff]
  %v485 = vld [vmem:[%s3 + $0x168] sm:$0xff]
  %v486 = vld [vmem:[%s3 + $0x170] sm:$0xff]
  %v487 = vld [vmem:[%s3 + $0x178] sm:$0xff]
  %488 = vmatprep.subr.mxu0 0.0
  %489 = vmatpush1.msra.mxu0 %v440
  %490 = vmatprep.subr.mxu0 0.0
  %491 = vmatpush1.msra.mxu0 %v441
  %492 = vmatprep.subr.mxu0 0.0
  %493 = vmatpush1.msra.mxu0 %v442
  %494 = vmatprep.subr.mxu0 0.0
  %495 = vmatpush1.msra.mxu0 %v443
  %496 = vmatprep.subr.mxu0 0.0
  %497 = vmatpush1.msra.mxu0 %v444
  %498 = vmatprep.subr.mxu0 0.0
  %499 = vmatpush1.msra.mxu0 %v445
  %500 = vmatprep.subr.mxu0 0.0
  %501 = vmatpush1.msra.mxu0 %v446
  %502 = vmatprep.subr.mxu0 0.0
  %503 = vmatpush1.msra.mxu0 %v447
  %504 = vmatprep.subr.mxu0 0.0
  %505 = vmatpush1.msra.mxu0 %v448
  %506 = vmatprep.subr.mxu0 0.0
  %507 = vmatpush1.msra.mxu0 %v449
  %508 = vmatprep.subr.mxu0 0.0
  %509 = vmatpush1.msra.mxu0 %v450
  %510 = vmatprep.subr.mxu0 0.0
  %511 = vmatpush1.msra.mxu0 %v451
  %512 = vmatprep.subr.mxu0 0.0
  %513 = vmatpush1.msra.mxu0 %v452
  %514 = vmatprep.subr.mxu0 0.0
  %515 = vmatpush1.msra.mxu0 %v453
  %516 = vmatprep.subr.mxu0 0.0
  %517 = vmatpush1.msra.mxu0 %v454
  %518 = vmatprep.subr.mxu0 0.0
  %519 = vmatpush1.msra.mxu0 %v455
  %520 = vmatprep.subr.mxu0 0.0
  %521 = vmatpush1.msra.mxu0 %v456
  %522 = vmatprep.subr.mxu0 0.0
  %523 = vmatpush1.msra.mxu0 %v457
  %524 = vmatprep.subr.mxu0 0.0
  %525 = vmatpush1.msra.mxu0 %v458
  %526 = vmatprep.subr.mxu0 0.0
  %527 = vmatpush1.msra.mxu0 %v459
  %528 = vmatprep.subr.mxu0 0.0
  %529 = vmatpush1.msra.mxu0 %v460
  %530 = vmatprep.subr.mxu0 0.0
  %531 = vmatpush1.msra.mxu0 %v461
  %532 = vmatprep.subr.mxu0 0.0
  %533 = vmatpush1.msra.mxu0 %v462
  %534 = vmatprep.subr.mxu0 0.0
  %535 = vmatpush1.msra.mxu0 %v463
  %536 = vmatprep.subr.mxu0 0.0
  %537 = vmatpush1.msra.mxu0 %v464
  %538 = vmatprep.subr.mxu0 0.0
  %539 = vmatpush1.msra.mxu0 %v465
  %540 = vmatprep.subr.mxu0 0.0
  %541 = vmatpush1.msra.mxu0 %v466
  %542 = vmatprep.subr.mxu0 0.0
  %543 = vmatpush1.msra.mxu0 %v467
  %544 = vmatprep.subr.mxu0 0.0
  %545 = vmatpush1.msra.mxu0 %v468
  %546 = vmatprep.subr.mxu0 0.0
  %547 = vmatpush1.msra.mxu0 %v469
  %548 = vmatprep.subr.mxu0 0.0
  %549 = vmatpush1.msra.mxu0 %v470
  %550 = vmatprep.subr.mxu0 0.0
  %551 = vmatpush1.msra.mxu0 %v471
  %552 = vmatprep.mubr.f32.mxu0 %v412
  %553 = vmatmul.mubr.f32.gmra.mrb[0].mxu0 %v424
  %v554 = vpop.f32.mrb[0].mxu0
  %v555 = vadd.f32 %v381, %v554
  %v556 = vpop.f32.mrb[0].mxu0
  %557 = vmatprep.mubr.f32.mxu0 %v413
  %558 = vmatmul.mubr.f32.gmra.mrb[0].mxu0 %v425
  %v559 = vpop.f32.mrb[0].mxu0
  %v560 = vadd.f32 %v387, %v559
  %v561 = vpop.f32.mrb[0].mxu0
  %562 = vmatprep.mubr.f32.mxu0 %v414
  %563 = vmatmul.mubr.f32.gmra.mrb[0].mxu0 %v426
  %v564 = vpop.f32.mrb[0].mxu0
  %v565 = vadd.f32 %v393, %v564
  %v566 = vpop.f32.mrb[0].mxu0
  %567 = vmatprep.mubr.f32.mxu0 %v415
  %568 = vmatmul.mubr.f32.gmra.mrb[0].mxu0 %v427
  %v569 = vpop.f32.mrb[0].mxu0
  %v570 = vadd.f32 %v399, %v569
  %v571 = vpop.f32.mrb[0].mxu0
  %572 = vdwg.mxu0
  %573 = vmatprep.subr.mxu0 0.0
  %574 = vmatpush1.msra.mxu0 %v472
  %575 = vmatprep.subr.mxu0 0.0
  %576 = vmatpush1.msra.mxu0 %v473
  %577 = vmatprep.subr.mxu0 0.0
  %578 = vmatpush1.msra.mxu0 %v474
  %579 = vmatprep.subr.mxu0 0.0
  %580 = vmatpush1.msra.mxu0 %v475
  %581 = vmatprep.subr.mxu0 0.0
  %582 = vmatpush1.msra.mxu0 %v476
  %583 = vmatprep.subr.mxu0 0.0
  %584 = vmatpush1.msra.mxu0 %v477
  %585 = vmatprep.subr.mxu0 0.0
  %586 = vmatpush1.msra.mxu0 %v478
  %587 = vmatprep.subr.mxu0 0.0
  %588 = vmatpush1.msra.mxu0 %v479
  %589 = vmatprep.subr.mxu0 0.0
  %590 = vmatpush1.msra.mxu0 %v480
  %591 = vmatprep.subr.mxu0 0.0
  %592 = vmatpush1.msra.mxu0 %v481
  %593 = vmatprep.subr.mxu0 0.0
  %594 = vmatpush1.msra.mxu0 %v482
  %595 = vmatprep.subr.mxu0 0.0
  %596 = vmatpush1.msra.mxu0 %v483
  %597 = vmatprep.subr.mxu0 0.0
  %598 = vmatpush1.msra.mxu0 %v484
  %599 = vmatprep.subr.mxu0 0.0
  %600 = vmatpush1.msra.mxu0 %v485
  %601 = vmatprep.subr.mxu0 0.0
  %602 = vmatpush1.msra.mxu0 %v486
  %603 = vmatprep.subr.mxu0 0.0
  %604 = vmatpush1.msra.mxu0 %v487
  %605 = vmatprep.subr.mxu0 0.0
  %606 = vmatpush1.msra.mxu0 0.0
  %607 = vmatprep.subr.mxu0 0.0
  %608 = vmatpush1.msra.mxu0 0.0
  %609 = vmatprep.subr.mxu0 0.0
  %610 = vmatpush1.msra.mxu0 0.0
  %611 = vmatprep.subr.mxu0 0.0
  %612 = vmatpush1.msra.mxu0 0.0
  %613 = vmatprep.subr.mxu0 0.0
  %614 = vmatpush1.msra.mxu0 0.0
  %615 = vmatprep.subr.mxu0 0.0
  %616 = vmatpush1.msra.mxu0 0.0
  %617 = vmatprep.subr.mxu0 0.0
  %618 = vmatpush1.msra.mxu0 0.0
  %619 = vmatprep.subr.mxu0 0.0
  %620 = vmatpush1.msra.mxu0 0.0
  %621 = vmatprep.subr.mxu0 0.0
  %622 = vmatpush1.msra.mxu0 0.0
  %623 = vmatprep.subr.mxu0 0.0
  %624 = vmatpush1.msra.mxu0 0.0
  %625 = vmatprep.subr.mxu0 0.0
  %626 = vmatpush1.msra.mxu0 0.0
  %627 = vmatprep.subr.mxu0 0.0
  %628 = vmatpush1.msra.mxu0 0.0
  %629 = vmatprep.subr.mxu0 0.0
  %630 = vmatpush1.msra.mxu0 0.0
  %631 = vmatprep.subr.mxu0 0.0
  %632 = vmatpush1.msra.mxu0 0.0
  %633 = vmatprep.subr.mxu0 0.0
  %634 = vmatpush1.msra.mxu0 0.0
  %635 = vmatprep.subr.mxu0 0.0
  %636 = vmatpush1.msra.mxu0 0.0
  %637 = vmatprep.mubr.f32.mxu0 0.0
  %638 = vmatmul.mubr.f32.gmra.mrb[0].mxu0 %v436
  %v639 = vpop.f32.mrb[0].mxu0
  %v640 = vadd.f32 %v555, %v639
  %v641 = vpop.f32.mrb[0].mxu0
  %642 = vmatprep.mubr.f32.mxu0 0.0
  %643 = vmatmul.mubr.f32.gmra.mrb[0].mxu0 %v437
  %v644 = vpop.f32.mrb[0].mxu0
  %v645 = vadd.f32 %v560, %v644
  %v646 = vpop.f32.mrb[0].mxu0
  %647 = vmatprep.mubr.f32.mxu0 0.0
  %648 = vmatmul.mubr.f32.gmra.mrb[0].mxu0 %v438
  %v649 = vpop.f32.mrb[0].mxu0
  %v650 = vadd.f32 %v565, %v649
  %v651 = vpop.f32.mrb[0].mxu0
  %652 = vmatprep.mubr.f32.mxu0 0.0
  %653 = vmatmul.mubr.f32.gmra.mrb[0].mxu0 %v439
  %v654 = vpop.f32.mrb[0].mxu0
  %v655 = vadd.f32 %v570, %v654
  %v656 = vpop.f32.mrb[0].mxu0
  %657 = vdwg.mxu0
  %v658 = vld [vmem:[%s4] sm:$0x1]
  %v660 = vlaneseq
  %v661 = vshrl.u32 %v660, 7
  %v662 = vsub.s32 0, %v661
  %v663 = vrot.slane %v658, %v662
  %v665 = vadd.f32 %v640, %v663
  %v666 = vadd.f32 %v645, %v663
  %v667 = vadd.f32 %v650, %v663
  %v668 = vadd.f32 %v655, %v663
  %v669 = vmax.f32 %v665, 0.0
  %v670 = vmax.f32 %v666, 0.0
  %v671 = vmax.f32 %v667, 0.0
  %v672 = vmax.f32 %v668, 0.0
  %673 = vst [vmem:[%s5] sm:$0xff] %v669
  %674 = vst [vmem:[%s5 + $0x8] sm:$0xff] %v670
  %675 = vst [vmem:[%s5 + $0x10] sm:$0xff] %v671
  %676 = vst [vmem:[%s5 + $0x18] sm:$0xff] %v672
  // Predicated region
  $region22: #{residual_block_forward.1} parent=0 // pred_check
    _
  $region23: #{residual_block_forward.1} parent=0 // pred_check_branch
    %678 = sbr.rel (0) target = $region25
  $region24: #{residual_block_forward.1} parent=0 // pred_region
    _
  $region25: #{residual_block_forward.1} parent=0 // pred_fallthru
    _
  // Predicated region
  $region26: #{residual_block_forward.1} parent=0 // pred_check
    _
  $region27: #{residual_block_forward.1} parent=0 // pred_check_branch
    %680 = sbr.rel (0) target = $region29
  $region28: #{residual_block_forward.1} parent=0 // pred_region
    _
  $region29: #{residual_block_forward.1} parent=0 // pred_fallthru
    _

</llo_original>
